<compile_context>
chip_gen: v7x
topology: tpu7x:2x2x1
jax: 0.10.0
libtpu: 0.0.40
codegen_flags: <defaults>
</compile_context>

<pallas_src>
import jax
import jax.numpy as jnp
from jax.experimental import pallas as pl
from jax.experimental.pallas import tpu as pltpu

_LANE = 128


def _round_up(n, m):
    return -(-n // m) * m


# ----------------------------------------------------------------------------
# Kernel
# ----------------------------------------------------------------------------
def _make_kernel(n_col_blocks):
    """Kernel for one (row tile, hidden-column tile) of the GRU gating step."""

    def kernel(x_ref, h_ref, wr_ref, wz_ref, win_ref, whn_ref, b_ref, o_ref):
        # x_ref : (tile_m, Kp)           input rows (bf16 or f32)
        # h_ref : (tile_m, Hp)           hidden rows
        # wr/wz : (Kp+Hp, tile_n)        fused [W_i ; W_h] columns for r / z
        # win   : (Kp, tile_n)           W_i columns for n
        # whn   : (Hp, tile_n)           W_h columns for n
        # b_ref : (4, tile_n) f32        rows: [b_r(fold), b_z(fold), b_in, b_hn]
        # o_ref : (tile_m, tile_n)       new hidden state (this column block)
        tn = o_ref.shape[-1]
        x_in = x_ref[...]
        h_in = h_ref[...]

        # Fused contraction operand for the r/z gates (lane-aligned concat).
        xh = jnp.concatenate([x_in, h_in], axis=-1)          # (tile_m, Kp+Hp)

        # r gate: one MXU matmul (depth Kp+Hp), bias b_i_r + b_h_r pre-folded.
        r_t = jax.nn.sigmoid(
            jnp.dot(xh, wr_ref[...], preferred_element_type=jnp.float32)
            + b_ref[0:1, :])
        # z gate.
        z_t = jax.nn.sigmoid(
            jnp.dot(xh, wz_ref[...], preferred_element_type=jnp.float32)
            + b_ref[1:2, :])
        # n gate: r multiplies only the hidden contribution, so the two halves
        # stay separate.  These matmuls (MXU) hide the r/z sigmoids (EUP).
        y_hn = (jnp.dot(h_in, whn_ref[...], preferred_element_type=jnp.float32)
                + b_ref[3:4, :])
        y_in = (jnp.dot(x_in, win_ref[...], preferred_element_type=jnp.float32)
                + b_ref[2:3, :])
        n_t = jnp.tanh(y_in + r_t * y_hn)

        # Blend: h_t = (1-z)*n + z*h == n + z*(h - n); only this column block.
        if n_col_blocks == 1:
            h_blk = h_in.astype(jnp.float32)
        else:
            col0 = pl.multiple_of(pl.program_id(1) * tn, _LANE)
            h_blk = h_ref[:, pl.ds(col0, tn)].astype(jnp.float32)
        o_ref[...] = (n_t + z_t * (h_blk - n_t)).astype(o_ref.dtype)

    return kernel


# ----------------------------------------------------------------------------
# VMEM budgeting / tile selection
# ----------------------------------------------------------------------------
def _vmem_budget():
    """Usable VMEM: physical capacity minus compiler-scratch headroom.
    ~112 MiB on v5e/v6e (128 MiB physical), ~56 MiB on v7x (64 MiB/TC)."""
    cap = 64 * 2 ** 20
    if hasattr(pltpu, "get_tpu_info"):
        try:
            cap = int(pltpu.get_tpu_info().vmem_capacity_bytes)
        except Exception:   # hardware query only; safe conservative fallback
            pass
    return max(32 * 2 ** 20, cap - max(8 * 2 ** 20, cap // 8))


def _vmem_need(tile_m, tile_n, kp, hp, w_item, o_item):
    """Conservative VMEM estimate for one grid step (double-buffered I/O and
    weight blocks, plus the in-kernel f32 intermediates)."""
    kf = kp + hp
    weights = 2 * (2 * kf + kp + hp) * tile_n * w_item   # W_r, W_z, W_in, W_hn
    bias = 2 * 4 * tile_n * 4
    acts = 2 * tile_m * (kp + hp) * w_item               # x / h input tiles
    outs = 2 * tile_m * tile_n * o_item                  # output tile
    inter = tile_m * kf * w_item                         # xh concat copy
    inter += 7 * tile_m * tile_n * 4                     # r,z,y_in,y_hn,n,h_blk,blend
    return weights + bias + acts + outs + inter


def _choose_tiles(m, kp, hp, w_item, o_item, budget, tile_m_req):
    """Pick (tile_m, tile_n): biggest row tile that fits, full-width columns
    (resident weights) if possible, otherwise 128-aligned column blocks."""
    sub = 8 * max(1, 4 // w_item)                 # min sublane rows: 8 f32 / 16 bf16
    tile_m = _round_up(max(int(tile_m_req), sub), sub)
    tile_m = min(tile_m, _round_up(m, sub))
    # v7x has two TensorCores sharing the "parallel" grid: prefer >= 2 row steps.
    if m > sub and _round_up(m, tile_m) // tile_m < 2:
        tile_m = max(sub, _round_up(pl.cdiv(m, 2), sub))

    units = hp // _LANE
    divisors = [d for d in range(1, units + 1) if units % d == 0]
    tile_n = hp
    while True:
        fit = False
        for nb in divisors:                       # largest tile_n first
            tile_n = hp // nb
            if _vmem_need(tile_m, tile_n, kp, hp, w_item, o_item) <= budget:
                fit = True
                break
        if fit or tile_m <= sub:
            break
        tile_m = max(sub, _round_up(tile_m // 2, sub))
    return tile_m, tile_n


# ----------------------------------------------------------------------------
# Parameter packing (hoist out of the per-call hot path; cache the result)
# ----------------------------------------------------------------------------
def pack_params(params, input_size, hidden_size, *, matmul_dtype=jnp.bfloat16):
    """Transpose to (in, out), split per gate, pad to 128 lanes, stack
    [W_i ; W_h] for the fused r/z contraction, fold b_i+b_h for r/z, cast."""
    k, h = input_size, hidden_size
    kp, hp = _round_up(k, _LANE), _round_up(h, _LANE)

    wi, wh = params["W_i_w"], params["W_h_w"]      # (3H, K) / (3H, H), rows [r|z|n]
    bi, bh = params["W_i_b"], params["W_h_b"]      # (3H,)

    def pad2(a, rows, cols):
        if a.shape == (rows, cols):
            return a
        return jnp.pad(a, ((0, rows - a.shape[0]), (0, cols - a.shape[1])))

    def gate(w, g):                                 # g-th gate, transposed (in, H)
        return w[g * h:(g + 1) * h, :].T

    def fuse(g):                                    # fused [x|h] weight: (Kp+Hp, Hp)
        return jnp.concatenate(
            [pad2(gate(wi, g), kp, hp), pad2(gate(wh, g), hp, hp)], axis=0
        ).astype(matmul_dtype)

    def bpad(v):
        return v if v.shape[0] == hp else jnp.pad(v, (0, hp - h))

    bias = jnp.stack([
        bpad(bi[0:h] + bh[0:h]),                    # r: pre-folded b_i + b_h
        bpad(bi[h:2 * h] + bh[h:2 * h]),            # z: pre-folded
        bpad(bi[2 * h:3 * h]),                      # n, input half
        bpad(bh[2 * h:3 * h]),                      # n, hidden half (inside r*(.))
    ]).astype(jnp.float32)                          # (4, Hp)

    return dict(
        w_r=fuse(0), w_z=fuse(1),
        w_in=pad2(gate(wi, 2), kp, hp).astype(matmul_dtype),
        w_hn=pad2(gate(wh, 2), hp, hp).astype(matmul_dtype),
        bias=bias,
        input_size=k, hidden_size=h, matmul_dtype=jnp.dtype(matmul_dtype),
    )


# ----------------------------------------------------------------------------
# Forward wrapper
# ----------------------------------------------------------------------------
def gru2_forward(x, hidden, params=None, *, packed=None, tile_m=512,
                 matmul_dtype=jnp.bfloat16, out_dtype=None):
    """x: (B, T, input_size), hidden: (B, T, H).  Returns (h_t, h_t).

    packed       : result of pack_params() (pre-packed weights; recommended).
    tile_m       : requested row tile over the flattened (B*T) axis.
    matmul_dtype : MXU operand dtype (bf16 default; accumulation is f32).
    out_dtype    : output dtype (default x.dtype; pass bf16 to halve HBM writes).
    """
    B, T, K = x.shape
    H = hidden.shape[-1]
    M = B * T
    out_dtype = x.dtype if out_dtype is None else jnp.dtype(out_dtype)

    if packed is None:
        if params is None:
            raise ValueError("provide either params or packed")
        packed = pack_params(params, K, H, matmul_dtype=matmul_dtype)
    assert packed["input_size"] == K and packed["hidden_size"] == H
    matmul_dtype = jnp.dtype(packed["matmul_dtype"])

    Kp, Hp = _round_up(K, _LANE), _round_up(H, _LANE)
    w_item = matmul_dtype.itemsize
    o_item = out_dtype.itemsize

    budget = _vmem_budget()
    tile_m, tile_n = _choose_tiles(M, Kp, Hp, w_item, o_item, budget, tile_m)
    Mp = _round_up(M, tile_m)
    n_col_blocks = Hp // tile_n
    need = _vmem_need(tile_m, tile_n, Kp, Hp, w_item, o_item)
    vmem_limit = int(min(budget, max(32 * 2 ** 20, 2 * need)))

    def prep(a, d, dp):                         # flatten, pad (if needed), cast
        a2 = a.reshape(M, d)
        if (Mp, dp) != (M, d):
            a2 = jnp.pad(a2, ((0, Mp - M), (0, dp - d)))
        return a2.astype(matmul_dtype)

    x2 = prep(x, K, Kp)
    h2 = prep(hidden, H, Hp)

    kf = Kp + Hp
    grid = (Mp // tile_m, n_col_blocks)

    out = pl.pallas_call(
        _make_kernel(n_col_blocks),
        out_shape=jax.ShapeDtypeStruct((Mp, Hp), out_dtype),
        grid_spec=pltpu.PrefetchScalarGridSpec(
            num_scalar_prefetch=0,
            grid=grid,
            in_specs=[
                pl.BlockSpec((tile_m, Kp), lambda i, j: (i, 0)),   # x rows
                pl.BlockSpec((tile_m, Hp), lambda i, j: (i, 0)),   # h rows
                pl.BlockSpec((kf, tile_n), lambda i, j: (0, j)),   # W_r (fused [x|h])
                pl.BlockSpec((kf, tile_n), lambda i, j: (0, j)),   # W_z
                pl.BlockSpec((Kp, tile_n), lambda i, j: (0, j)),   # W_in
                pl.BlockSpec((Hp, tile_n), lambda i, j: (0, j)),   # W_hn
                pl.BlockSpec((4, tile_n), lambda i, j: (0, j)),    # biases (f32)
            ],
            out_specs=pl.BlockSpec((tile_m, tile_n), lambda i, j: (i, j)),
        ),
        compiler_params=pltpu.CompilerParams(
            dimension_semantics=("parallel", "parallel"),
            vmem_limit_bytes=vmem_limit,
        ),
    )(x2, h2, packed["w_r"], packed["w_z"], packed["w_in"], packed["w_hn"],
      packed["bias"])

    h_t = out[:M, :H].reshape(B, T, H)
    return (h_t, h_t)


# ----------------------------------------------------------------------------
# Init + pure-JAX reference (mirrors the PyTorch forward)
# ----------------------------------------------------------------------------
def init_params(key, input_size, hidden_size):
    """Deterministic synthetic init; shapes match nn.Linear(in, 3*hidden)."""
    k1, k2, k3, k4 = jax.random.split(key, 4)
    s_i = 1.0 / jnp.sqrt(input_size)
    s_h = 1.0 / jnp.sqrt(hidden_size)
    return {
        "W_i_w": jax.random.uniform(k1, (3 * hidden_size, input_size),
                                    jnp.float32, -s_i, s_i),
        "W_i_b": jax.random.uniform(k2, (3 * hidden_size,),
                                    jnp.float32, -s_i, s_i),
        "W_h_w": jax.random.uniform(k3, (3 * hidden_size, hidden_size),
                                    jnp.float32, -s_h, s_h),
        "W_h_b": jax.random.uniform(k4, (3 * hidden_size,),
                                    jnp.float32, -s_h, s_h),
    }


def _reference(x, hidden, params, matmul_dtype=jnp.float32):
    """Pure-JAX reference of the PyTorch forward.  If matmul_dtype is bf16,
    emulates the kernel's bf16 operand rounding (math stays f32)."""
    cast = lambda a: a.astype(matmul_dtype).astype(jnp.float32)
    xm, hm = cast(x), cast(hidden)
    y_i = xm @ cast(params["W_i_w"]).T + params["W_i_b"]
    y_h = hm @ cast(params["W_h_w"]).T + params["W_h_b"]
    y_ir, y_iz, y_in = jnp.split(y_i, 3, axis=2)
    y_hr, y_hz, y_hn = jnp.split(y_h, 3, axis=2)
    r_t = jax.nn.sigmoid(y_ir + y_hr)
    z_t = jax.nn.sigmoid(y_iz + y_hz)
    n_t = jnp.tanh(y_in + r_t * y_hn)
    return (1 - z_t) * n_t + z_t * hm


if __name__ == "__main__":
    B, T, input_size, hidden_size = 2, 8, 16, 32

    key = jax.random.PRNGKey(0)
    k_x, k_h, k_p = jax.random.split(key, 3)
    x = jax.random.normal(k_x, (B, T, input_size), jnp.float32)
    hidden = jax.random.normal(k_h, (B, T, hidden_size), jnp.float32)
    params = init_params(k_p, input_size, hidden_size)

    # Exactness check: f32-matmul path vs. the PyTorch-style reference.
    ref_f32 = _reference(x, hidden, params)
    h_f32, _ = gru2_forward(x, hidden, params, matmul_dtype=jnp.float32)
    h_f32 = jax.block_until_ready(h_f32)
    assert h_f32.shape == (B, T, hidden_size)
    assert jnp.allclose(h_f32, ref_f32, atol=1e-5, rtol=1e-5), "f32 path mismatch"

    # Performance path: bf16 MXU operands, f32 accumulation/gates; weights
    # pre-packed once and reused (hoisted out of the per-call hot path).
    packed = pack_params(params, input_size, hidden_size)
    ref_bf16 = _reference(x, hidden, params, matmul_dtype=jnp.bfloat16)
    h_t, h_t2 = gru2_forward(x, hidden, packed=packed)
    h_t = jax.block_until_ready(h_t)
    assert h_t.shape == (B, T, hidden_size) and h_t.dtype == x.dtype
    assert jnp.allclose(h_t, ref_bf16, atol=2e-3, rtol=2e-3), "bf16 path mismatch"
    assert jnp.array_equal(h_t, h_t2)

    # bf16 output variant (halves the dominant HBM stream when mem-bound).
    h_bf16, _ = gru2_forward(x, hidden, packed=packed, out_dtype=jnp.bfloat16)
    h_bf16 = jax.block_until_ready(h_bf16)
    assert h_bf16.dtype == jnp.bfloat16
    assert jnp.allclose(h_bf16.astype(jnp.float32), ref_bf16,
                        atol=2e-2, rtol=2e-2), "bf16-output path mismatch"

    print("KERNEL_OK")
</pallas_src>

<mosaic_0001>
module attributes {stable_mosaic.version = 11 : i64} {
  func.func @kernel(%arg0: i32, %arg1: i32, %arg2: memref<8x128xf32, #tpu.memory_space<vmem>>, %arg3: memref<8x128xf32, #tpu.memory_space<vmem>>, %arg4: memref<256x128xf32, #tpu.memory_space<vmem>>, %arg5: memref<256x128xf32, #tpu.memory_space<vmem>>, %arg6: memref<128x128xf32, #tpu.memory_space<vmem>>, %arg7: memref<128x128xf32, #tpu.memory_space<vmem>>, %arg8: memref<4x128xf32, #tpu.memory_space<vmem>>, %arg9: memref<8x128xf32, #tpu.memory_space<vmem>>) attributes {dimension_semantics = [#tpu.dimension_semantics<parallel>, #tpu.dimension_semantics<parallel>], iteration_bounds = array<i64: 2, 1>, scalar_prefetch = 0 : i64, scratch_operands = 0 : i64, tpu.core_type = #tpu.core_type<tc>, window_params = [{transform_indices = @transform_0, window_bounds = array<i64: 8, 128>}, {transform_indices = @transform_1, window_bounds = array<i64: 8, 128>}, {transform_indices = @transform_2, window_bounds = array<i64: 256, 128>}, {transform_indices = @transform_3, window_bounds = array<i64: 256, 128>}, {transform_indices = @transform_4, window_bounds = array<i64: 128, 128>}, {transform_indices = @transform_5, window_bounds = array<i64: 128, 128>}, {transform_indices = @transform_6, window_bounds = array<i64: 4, 128>}, {transform_indices = @transform_7, window_bounds = array<i64: 8, 128>}]} {
    %c0 = arith.constant 0 : index
    %c0_0 = arith.constant 0 : index
    %0 = vector.load %arg2[%c0, %c0_0] : memref<8x128xf32, #tpu.memory_space<vmem>>, vector<8x128xf32>
    %c0_1 = arith.constant 0 : index
    %c0_2 = arith.constant 0 : index
    %1 = vector.load %arg3[%c0_1, %c0_2] : memref<8x128xf32, #tpu.memory_space<vmem>>, vector<8x128xf32>
    %2 = tpu.concatenate %0, %1 in 1 : vector<8x128xf32>, vector<8x128xf32> -> vector<8x256xf32>
    %c0_3 = arith.constant 0 : index
    %c0_4 = arith.constant 0 : index
    %3 = vector.load %arg4[%c0_3, %c0_4] : memref<256x128xf32, #tpu.memory_space<vmem>>, vector<256x128xf32>
    %cst = arith.constant dense<0.000000e+00> : vector<8x128xf32>
    %4 = tpu.matmul %2, %3, %cst {dimension_numbers = #tpu.dot_dimension_numbers<[1], [0], [0], [1], [0, 0, 1, 1], [], []>} : vector<8x256xf32>, vector<256x128xf32>, vector<8x128xf32> -> vector<8x128xf32>
    %c0_5 = arith.constant 0 : index
    %c0_6 = arith.constant 0 : index
    %5 = vector.load %arg8[%c0_5, %c0_6] : memref<4x128xf32, #tpu.memory_space<vmem>>, vector<1x128xf32>
    %6 = vector.broadcast %5 : vector<1x128xf32> to vector<8x128xf32>
    %7 = arith.addf %4, %6 : vector<8x128xf32>
    %8 = arith.negf %7 : vector<8x128xf32>
    %9 = math.exp %8 : vector<8x128xf32>
    %cst_7 = arith.constant 1.000000e+00 : f32
    %10 = vector.broadcast %cst_7 : f32 to vector<8x128xf32>
    %11 = arith.addf %10, %9 : vector<8x128xf32>
    %12 = arith.divf %10, %11 : vector<8x128xf32>
    %c0_8 = arith.constant 0 : index
    %c0_9 = arith.constant 0 : index
    %13 = vector.load %arg5[%c0_8, %c0_9] : memref<256x128xf32, #tpu.memory_space<vmem>>, vector<256x128xf32>
    %cst_10 = arith.constant dense<0.000000e+00> : vector<8x128xf32>
    %14 = tpu.matmul %2, %13, %cst_10 {dimension_numbers = #tpu.dot_dimension_numbers<[1], [0], [0], [1], [0, 0, 1, 1], [], []>} : vector<8x256xf32>, vector<256x128xf32>, vector<8x128xf32> -> vector<8x128xf32>
    %c1 = arith.constant 1 : index
    %c0_11 = arith.constant 0 : index
    %15 = vector.load %arg8[%c1, %c0_11] : memref<4x128xf32, #tpu.memory_space<vmem>>, vector<1x128xf32>
    %16 = vector.broadcast %15 : vector<1x128xf32> to vector<8x128xf32>
    %17 = arith.addf %14, %16 : vector<8x128xf32>
    %18 = arith.negf %17 : vector<8x128xf32>
    %19 = math.exp %18 : vector<8x128xf32>
    %cst_12 = arith.constant 1.000000e+00 : f32
    %20 = vector.broadcast %cst_12 : f32 to vector<8x128xf32>
    %21 = arith.addf %20, %19 : vector<8x128xf32>
    %22 = arith.divf %20, %21 : vector<8x128xf32>
    %c0_13 = arith.constant 0 : index
    %c0_14 = arith.constant 0 : index
    %23 = vector.load %arg7[%c0_13, %c0_14] : memref<128x128xf32, #tpu.memory_space<vmem>>, vector<128x128xf32>
    %cst_15 = arith.constant dense<0.000000e+00> : vector<8x128xf32>
    %24 = tpu.matmul %1, %23, %cst_15 {dimension_numbers = #tpu.dot_dimension_numbers<[1], [0], [0], [1], [0, 0, 1, 1], [], []>} : vector<8x128xf32>, vector<128x128xf32>, vector<8x128xf32> -> vector<8x128xf32>
    %c3 = arith.constant 3 : index
    %c0_16 = arith.constant 0 : index
    %25 = vector.load %arg8[%c3, %c0_16] : memref<4x128xf32, #tpu.memory_space<vmem>>, vector<1x128xf32>
    %26 = vector.broadcast %25 : vector<1x128xf32> to vector<8x128xf32>
    %27 = arith.addf %24, %26 : vector<8x128xf32>
    %c0_17 = arith.constant 0 : index
    %c0_18 = arith.constant 0 : index
    %28 = vector.load %arg6[%c0_17, %c0_18] : memref<128x128xf32, #tpu.memory_space<vmem>>, vector<128x128xf32>
    %cst_19 = arith.constant dense<0.000000e+00> : vector<8x128xf32>
    %29 = tpu.matmul %0, %28, %cst_19 {dimension_numbers = #tpu.dot_dimension_numbers<[1], [0], [0], [1], [0, 0, 1, 1], [], []>} : vector<8x128xf32>, vector<128x128xf32>, vector<8x128xf32> -> vector<8x128xf32>
    %c2 = arith.constant 2 : index
    %c0_20 = arith.constant 0 : index
    %30 = vector.load %arg8[%c2, %c0_20] : memref<4x128xf32, #tpu.memory_space<vmem>>, vector<1x128xf32>
    %31 = vector.broadcast %30 : vector<1x128xf32> to vector<8x128xf32>
    %32 = arith.addf %29, %31 : vector<8x128xf32>
    %33 = arith.mulf %12, %27 : vector<8x128xf32>
    %34 = arith.addf %32, %33 : vector<8x128xf32>
    %35 = math.tanh %34 : vector<8x128xf32>
    %36 = arith.subf %1, %35 : vector<8x128xf32>
    %37 = arith.mulf %22, %36 : vector<8x128xf32>
    %38 = arith.addf %35, %37 : vector<8x128xf32>
    %c0_21 = arith.constant 0 : index
    %c0_22 = arith.constant 0 : index
    %39 = vector.load %arg9[%c0_21, %c0_22] : memref<8x128xf32, #tpu.memory_space<vmem>>, vector<8x128xf32>
    tpu.vector_store %arg9[%c0_21, %c0_22], %38 {strides = array<i32>} : memref<8x128xf32, #tpu.memory_space<vmem>>, vector<8x128xf32>,
    return
  }
  func.func @transform_0(%arg0: i32, %arg1: i32) -> (i32, i32) {
    %c0_i32 = arith.constant 0 : i32
    %c0_i32_0 = arith.constant 0 : i32
    return %arg0, %c0_i32 : i32, i32
  }
  func.func @transform_1(%arg0: i32, %arg1: i32) -> (i32, i32) {
    %c0_i32 = arith.constant 0 : i32
    %c0_i32_0 = arith.constant 0 : i32
    return %arg0, %c0_i32 : i32, i32
  }
  func.func @transform_2(%arg0: i32, %arg1: i32) -> (i32, i32) {
    %c0_i32 = arith.constant 0 : i32
    %c0_i32_0 = arith.constant 0 : i32
    return %c0_i32, %arg1 : i32, i32
  }
  func.func @transform_3(%arg0: i32, %arg1: i32) -> (i32, i32) {
    %c0_i32 = arith.constant 0 : i32
    %c0_i32_0 = arith.constant 0 : i32
    return %c0_i32, %arg1 : i32, i32
  }
  func.func @transform_4(%arg0: i32, %arg1: i32) -> (i32, i32) {
    %c0_i32 = arith.constant 0 : i32
    %c0_i32_0 = arith.constant 0 : i32
    return %c0_i32, %arg1 : i32, i32
  }
  func.func @transform_5(%arg0: i32, %arg1: i32) -> (i32, i32) {
    %c0_i32 = arith.constant 0 : i32
    %c0_i32_0 = arith.constant 0 : i32
    return %c0_i32, %arg1 : i32, i32
  }
  func.func @transform_6(%arg0: i32, %arg1: i32) -> (i32, i32) {
    %c0_i32 = arith.constant 0 : i32
    %c0_i32_0 = arith.constant 0 : i32
    return %c0_i32, %arg1 : i32, i32
  }
  func.func @transform_7(%arg0: i32, %arg1: i32) -> (i32, i32) {
    %c0_i32 = arith.constant 0 : i32
    return %arg0, %arg1 : i32, i32
  }
}

</mosaic_0001>

<llo_original>
// kernel: tpu_custom_call.1
$region0: #{tpu_custom_call.1}
  #allocation0 [shape = 'u32[]', space=smem, size = 0x4, offset = 0x4, fixed_abs, tag = 'smem constant byte address 0x4 - core index']
  #allocation1 [shape = 'u32[144,128]{1,0:T(1,128)}', space=vmem, size = 0x12000, scoped, tag = 'internal scratch']
  %s0 = inlined_call_operand.hbm [shape: f32[16,128], index: 0, kind: input, shape index: {}]
  %s1 = inlined_call_operand.hbm [shape: f32[16,128], index: 1, kind: input, shape index: {}]
  %s2 = inlined_call_operand.hbm [shape: f32[256,128], index: 2, kind: input, shape index: {}]
  %s3 = inlined_call_operand.hbm [shape: f32[256,128], index: 3, kind: input, shape index: {}]
  %s4 = inlined_call_operand.hbm [shape: f32[128,128], index: 4, kind: input, shape index: {}]
  %s5 = inlined_call_operand.hbm [shape: f32[128,128], index: 5, kind: input, shape index: {}]
  %s6 = inlined_call_operand.vmem [shape: f32[4,128], index: 6, kind: input, shape index: {}]
  %s7 = inlined_call_operand.hbm [shape: f32[16,128], index: 7, kind: output, shape index: {}]
  %s8 = sld [smem:[#allocation0]]
  $region85: #{tpu_custom_call.1} parent=0
    _
  %s10 = ssub.s32 1, %s8
  %s11 = scalar_select 0, %s10, %s8
  $region1: #{tpu_custom_call.1} parent=0
    #allocation2 [shape = 'u8[8192]{0}', space=vmem, size = 0x2000, scoped, tag = 'input window, operand 0']
    #allocation3 [shape = 's32[2]{0}', space=sflag, size = 0x8, scoped, tag = 'scoped memory for tpu_custom_call.1']
    #allocation4 [shape = 's32[2]{0}', space=sflag, size = 0x8, scoped, tag = 'scoped memory for tpu_custom_call.1']
    #allocation5 [shape = 'u8[8192]{0}', space=vmem, size = 0x2000, scoped, tag = 'input window, operand 1']
    #allocation6 [shape = 's32[2]{0}', space=sflag, size = 0x8, scoped, tag = 'scoped memory for tpu_custom_call.1']
    #allocation7 [shape = 'u8[131072]{0}', space=vmem, size = 0x20000, scoped, tag = 'input window, operand 2, single buffered']
    #allocation8 [shape = 'u8[131072]{0}', space=vmem, size = 0x20000, scoped, tag = 'input window, operand 3, single buffered']
    #allocation9 [shape = 's32[1]{0}', space=sflag, size = 0x4, scoped, tag = 'scoped memory for tpu_custom_call.1']
    #allocation10 [shape = 'u8[65536]{0}', space=vmem, size = 0x10000, scoped, tag = 'input window, operand 4, single buffered']
    #allocation11 [shape = 'u8[65536]{0}', space=vmem, size = 0x10000, scoped, tag = 'input window, operand 5, single buffered']
    #allocation12 [shape = 's32[1]{0}', space=sflag, size = 0x4, scoped, tag = 'scoped memory for tpu_custom_call.1']
    #allocation13 [shape = 'u8[8192]{0}', space=vmem, size = 0x2000, scoped, tag = 'output window, operand 0']
    %12 = vsyncpa [#allocation3], 0
    %s13 = scalar_lea.sflag [#allocation3], 1
    %14 = vsyncpa %s13, 0
    %15 = vsyncpa [#allocation6], 0
    %s16 = scalar_lea.sflag [#allocation6], 1
    %17 = vsyncpa %s16, 0
    %18 = vsyncpa [#allocation9], 0
    %19 = vsyncpa [#allocation12], 0
    %20 = vsyncpa [#allocation4], 0
    %s21 = scalar_lea.sflag [#allocation4], 1
    %22 = vsyncpa %s21, 0
    loop: start=0, step=1, limit=4
    $region2: #{tpu_custom_call.1} parent=1 // loop_pre_header
      _
    $region3: #{tpu_custom_call.1} parent=1 // loop_header
      %s24 = sphi 0, %s28
      %p25 = scmp.ge.s32.totalorder %s24, 4
      %s31 = sphi 0, %s43
      %s32 = sphi 0, %s39
      %s33 = sphi 0, %s31
      %s34 = sphi 0, %s32
      %s35 = sphi 0, %s33
      %s36 = sphi 0, %s34
      %s46 = sphi 0, %s48
      %s49 = sphi 0, %s46
      %s50 = sphi 0, %s49
      %s66 = sphi 0, %s50
      %s72 = sphi 0, %s74
      %s75 = sphi 0, %s72
      %s76 = sphi 0, %s75
      %s92 = sphi 0, %s76
      %s98 = sphi 0, %s100
      %s101 = sphi 0, %s98
      %s102 = sphi 0, %s101
      %s118 = sphi 0, %s102
      %s124 = sphi 0, %s126
      %s127 = sphi 0, %s124
      %s128 = sphi 0, %s127
      %s144 = sphi 0, %s128
      %s150 = sphi 0, %s152
      %s153 = sphi 0, %s150
      %s154 = sphi 0, %s153
      %s170 = sphi 0, %s154
      %s176 = sphi 0, %s178
      %s179 = sphi 0, %s176
      %s180 = sphi 0, %s179
      %s196 = sphi 0, %s180
      %s202 = sphi 0, %s204
      %s205 = sphi 0, %s202
      %s206 = sphi 0, %s205
      %s222 = sphi 0, %s206
      %s230 = sphi 0, %s232
      %s233 = sphi 0, %s230
      %s234 = sphi 0, %s233
      %s250 = sphi 0, %s234
    $region4: #{tpu_custom_call.1} parent=1 // loop_header_branch
      %27 = sbr.rel (%p25) target = $region8
    $region5: #{tpu_custom_call.1} parent=1 // loop_body
      %s29 = ssub.s32 %s24, 1
      %s30 = ssub.s32 %s24, 2
      %s37 = sadd.s32 1, %s32
      %p38 = scmp.ge.s32.totalorder %s37, 1
      %s39 = scalar_select %p38, 0, %s37
      %s40 = sadd.s32 1, %s31
      %s41 = scalar_select %p38, %s40, %s31
      %p42 = scmp.ge.s32.totalorder %s41, 2
      %s43 = scalar_select %p42, 0, %s41
      %s44 = ssub.s32 %s31, %s43
      %p45 = scmp.eq.s32.totalorder %s44, 0
      %s47 = sadd.s32 %s46, 1
      %s48 = scalar_select %p45, %s46, %s47
      %p51 = pneg %p45
      %p52 = scmp.eq.s32.totalorder %s24, 1
      %p53 = por %p51, %p52
      %p54 = scmp.ne.s32.totalorder %s46, %s49
      %p55 = scmp.eq.s32.totalorder %s24, 0
      %p56 = por %p54, %p55
      %p57 = scmp.ne.s32.totalorder %s46, %s49
      %p58 = scmp.eq.s32.totalorder %s29, 1
      %p59 = por %p57, %p58
      %p60 = scmp.ne.s32.totalorder %s49, %s50
      %p61 = scmp.eq.s32.totalorder %s29, 0
      %p62 = por %p60, %p61
      %p63 = scmp.ne.s32.totalorder %s49, %s50
      %p64 = scmp.eq.s32.totalorder %s30, 1
      %p65 = por %p63, %p64
      %p67 = scmp.ne.s32.totalorder %s50, %s66
      %p68 = scmp.eq.s32.totalorder %s30, 0
      %p69 = por %p67, %p68
      %s70 = ssub.s32 %s31, %s43
      %p71 = scmp.eq.s32.totalorder %s70, 0
      %s73 = sadd.s32 %s72, 1
      %s74 = scalar_select %p71, %s72, %s73
      %p77 = pneg %p71
      %p78 = scmp.eq.s32.totalorder %s24, 1
      %p79 = por %p77, %p78
      %p80 = scmp.ne.s32.totalorder %s72, %s75
      %p81 = scmp.eq.s32.totalorder %s24, 0
      %p82 = por %p80, %p81
      %p83 = scmp.ne.s32.totalorder %s72, %s75
      %p84 = scmp.eq.s32.totalorder %s29, 1
      %p85 = por %p83, %p84
      %p86 = scmp.ne.s32.totalorder %s75, %s76
      %p87 = scmp.eq.s32.totalorder %s29, 0
      %p88 = por %p86, %p87
      %p89 = scmp.ne.s32.totalorder %s75, %s76
      %p90 = scmp.eq.s32.totalorder %s30, 1
      %p91 = por %p89, %p90
      %p93 = scmp.ne.s32.totalorder %s76, %s92
      %p94 = scmp.eq.s32.totalorder %s30, 0
      %p95 = por %p93, %p94
      %s96 = ssub.s32 %s32, %s39
      %p97 = scmp.eq.s32.totalorder %s96, 0
      %s99 = sadd.s32 %s98, 1
      %s100 = scalar_select %p97, %s98, %s99
      %p103 = pneg %p97
      %p104 = scmp.eq.s32.totalorder %s24, 1
      %p105 = por %p103, %p104
      %p106 = scmp.ne.s32.totalorder %s98, %s101
      %p107 = scmp.eq.s32.totalorder %s24, 0
      %p108 = por %p106, %p107
      %p109 = scmp.ne.s32.totalorder %s98, %s101
      %p110 = scmp.eq.s32.totalorder %s29, 1
      %p111 = por %p109, %p110
      %p112 = scmp.ne.s32.totalorder %s101, %s102
      %p113 = scmp.eq.s32.totalorder %s29, 0
      %p114 = por %p112, %p113
      %p115 = scmp.ne.s32.totalorder %s101, %s102
      %p116 = scmp.eq.s32.totalorder %s30, 1
      %p117 = por %p115, %p116
      %p119 = scmp.ne.s32.totalorder %s102, %s118
      %p120 = scmp.eq.s32.totalorder %s30, 0
      %p121 = por %p119, %p120
      %s122 = ssub.s32 %s32, %s39
      %p123 = scmp.eq.s32.totalorder %s122, 0
      %s125 = sadd.s32 %s124, 1
      %s126 = scalar_select %p123, %s124, %s125
      %p129 = pneg %p123
      %p130 = scmp.eq.s32.totalorder %s24, 1
      %p131 = por %p129, %p130
      %p132 = scmp.ne.s32.totalorder %s124, %s127
      %p133 = scmp.eq.s32.totalorder %s24, 0
      %p134 = por %p132, %p133
      %p135 = scmp.ne.s32.totalorder %s124, %s127
      %p136 = scmp.eq.s32.totalorder %s29, 1
      %p137 = por %p135, %p136
      %p138 = scmp.ne.s32.totalorder %s127, %s128
      %p139 = scmp.eq.s32.totalorder %s29, 0
      %p140 = por %p138, %p139
      %p141 = scmp.ne.s32.totalorder %s127, %s128
      %p142 = scmp.eq.s32.totalorder %s30, 1
      %p143 = por %p141, %p142
      %p145 = scmp.ne.s32.totalorder %s128, %s144
      %p146 = scmp.eq.s32.totalorder %s30, 0
      %p147 = por %p145, %p146
      %s148 = ssub.s32 %s32, %s39
      %p149 = scmp.eq.s32.totalorder %s148, 0
      %s151 = sadd.s32 %s150, 1
      %s152 = scalar_select %p149, %s150, %s151
      %p155 = pneg %p149
      %p156 = scmp.eq.s32.totalorder %s24, 1
      %p157 = por %p155, %p156
      %p158 = scmp.ne.s32.totalorder %s150, %s153
      %p159 = scmp.eq.s32.totalorder %s24, 0
      %p160 = por %p158, %p159
      %p161 = scmp.ne.s32.totalorder %s150, %s153
      %p162 = scmp.eq.s32.totalorder %s29, 1
      %p163 = por %p161, %p162
      %p164 = scmp.ne.s32.totalorder %s153, %s154
      %p165 = scmp.eq.s32.totalorder %s29, 0
      %p166 = por %p164, %p165
      %p167 = scmp.ne.s32.totalorder %s153, %s154
      %p168 = scmp.eq.s32.totalorder %s30, 1
      %p169 = por %p167, %p168
      %p171 = scmp.ne.s32.totalorder %s154, %s170
      %p172 = scmp.eq.s32.totalorder %s30, 0
      %p173 = por %p171, %p172
      %s174 = ssub.s32 %s32, %s39
      %p175 = scmp.eq.s32.totalorder %s174, 0
      %s177 = sadd.s32 %s176, 1
      %s178 = scalar_select %p175, %s176, %s177
      %p181 = pneg %p175
      %p182 = scmp.eq.s32.totalorder %s24, 1
      %p183 = por %p181, %p182
      %p184 = scmp.ne.s32.totalorder %s176, %s179
      %p185 = scmp.eq.s32.totalorder %s24, 0
      %p186 = por %p184, %p185
      %p187 = scmp.ne.s32.totalorder %s176, %s179
      %p188 = scmp.eq.s32.totalorder %s29, 1
      %p189 = por %p187, %p188
      %p190 = scmp.ne.s32.totalorder %s179, %s180
      %p191 = scmp.eq.s32.totalorder %s29, 0
      %p192 = por %p190, %p191
      %p193 = scmp.ne.s32.totalorder %s179, %s180
      %p194 = scmp.eq.s32.totalorder %s30, 1
      %p195 = por %p193, %p194
      %p197 = scmp.ne.s32.totalorder %s180, %s196
      %p198 = scmp.eq.s32.totalorder %s30, 0
      %p199 = por %p197, %p198
      %s200 = ssub.s32 %s32, %s39
      %p201 = scmp.eq.s32.totalorder %s200, 0
      %s203 = sadd.s32 %s202, 1
      %s204 = scalar_select %p201, %s202, %s203
      %p207 = pneg %p201
      %p208 = scmp.eq.s32.totalorder %s24, 1
      %p209 = por %p207, %p208
      %p210 = scmp.ne.s32.totalorder %s202, %s205
      %p211 = scmp.eq.s32.totalorder %s24, 0
      %p212 = por %p210, %p211
      %p213 = scmp.ne.s32.totalorder %s202, %s205
      %p214 = scmp.eq.s32.totalorder %s29, 1
      %p215 = por %p213, %p214
      %p216 = scmp.ne.s32.totalorder %s205, %s206
      %p217 = scmp.eq.s32.totalorder %s29, 0
      %p218 = por %p216, %p217
      %p219 = scmp.ne.s32.totalorder %s205, %s206
      %p220 = scmp.eq.s32.totalorder %s30, 1
      %p221 = por %p219, %p220
      %p223 = scmp.ne.s32.totalorder %s206, %s222
      %p224 = scmp.eq.s32.totalorder %s30, 0
      %p225 = por %p223, %p224
      %s226 = ssub.s32 %s31, %s43
      %s227 = ssub.s32 %s32, %s39
      %s228 = sor.u32 %s226, %s227
      %p229 = scmp.eq.s32.totalorder %s228, 0
      %s231 = sadd.s32 %s230, 1
      %s232 = scalar_select %p229, %s230, %s231
      %p235 = pneg %p229
      %p236 = scmp.eq.s32.totalorder %s24, 1
      %p237 = por %p235, %p236
      %p238 = scmp.ne.s32.totalorder %s230, %s233
      %p239 = scmp.eq.s32.totalorder %s24, 0
      %p240 = por %p238, %p239
      %p241 = scmp.ne.s32.totalorder %s230, %s233
      %p242 = scmp.eq.s32.totalorder %s29, 1
      %p243 = por %p241, %p242
      %p244 = scmp.ne.s32.totalorder %s233, %s234
      %p245 = scmp.eq.s32.totalorder %s29, 0
      %p246 = por %p244, %p245
      %p247 = scmp.ne.s32.totalorder %s233, %s234
      %p248 = scmp.eq.s32.totalorder %s30, 1
      %p249 = por %p247, %p248
      %p251 = scmp.ne.s32.totalorder %s234, %s250
      %p252 = scmp.eq.s32.totalorder %s30, 0
      %p253 = por %p251, %p252
      %p254 = scmp.le.s32.totalorder 1, %s24
      %p255 = scmp.lt.s32.totalorder %s24, 3
      %p256 = pnand %p254, %p255
      %p257 = pneg %p256
      // Predicated region
      $region9: #{tpu_custom_call.1} parent=5 // pred_check
        _
      $region10: #{tpu_custom_call.1} parent=5 // pred_check_branch
        %259 = sbr.rel (%p256) target = $region12
      $region11: #{tpu_custom_call.1} parent=5 // pred_region
        %s260 = ssub.s32 %s24, 1
        // Predicated region
        $region13: #{tpu_custom_call.1} parent=11 // pred_check
          %p261 = pneg %p114
        $region14: #{tpu_custom_call.1} parent=11 // pred_check_branch
          %263 = sbr.rel (%p261) target = $region16
        $region15: #{tpu_custom_call.1} parent=11 // pred_region
          %s265 = ssub.s32 4096, 4096
          %266 = vsyncadd [#allocation6], %s265
          %s267 = smul.addr %s34, 128
          %s268 = scalar_lea.hbm %s2, %s267
          %s269 = sshll.u32 [#allocation7], 4
          %s270 = int_to_ptr.vmem [resolvable:$true] %s269
          %275 = dma.hbm_to_vmem [thread:$0]  %s268, 4096, %s270, [#allocation6], 128, 128, 8
        $region16: #{tpu_custom_call.1} parent=11 // pred_fallthru
          _
        // Predicated region
        $region17: #{tpu_custom_call.1} parent=11 // pred_check
          %p276 = pneg %p140
        $region18: #{tpu_custom_call.1} parent=11 // pred_check_branch
          %278 = sbr.rel (%p276) target = $region20
        $region19: #{tpu_custom_call.1} parent=11 // pred_region
          %s280 = ssub.s32 4096, 4096
          %281 = vsyncadd [#allocation9], %s280
          %s282 = smul.addr %s34, 128
          %s283 = scalar_lea.hbm %s3, %s282
          %s284 = sshll.u32 [#allocation8], 4
          %s285 = int_to_ptr.vmem [resolvable:$true] %s284
          %290 = dma.hbm_to_vmem [thread:$0]  %s283, 4096, %s285, [#allocation9], 128, 128, 8
        $region20: #{tpu_custom_call.1} parent=11 // pred_fallthru
          _
        // Predicated region
        $region21: #{tpu_custom_call.1} parent=11 // pred_check
          %p291 = pneg %p166
        $region22: #{tpu_custom_call.1} parent=11 // pred_check_branch
          %293 = sbr.rel (%p291) target = $region24
        $region23: #{tpu_custom_call.1} parent=11 // pred_region
          %s295 = ssub.s32 2048, 2048
          %296 = vsyncadd [#allocation9], %s295
          %s297 = smul.addr %s34, 128
          %s298 = scalar_lea.hbm %s4, %s297
          %s299 = sshll.u32 [#allocation10], 4
          %s300 = int_to_ptr.vmem [resolvable:$true] %s299
          %305 = dma.hbm_to_vmem [thread:$0]  %s298, 2048, %s300, [#allocation9], 128, 128, 8
        $region24: #{tpu_custom_call.1} parent=11 // pred_fallthru
          _
        // Predicated region
        $region25: #{tpu_custom_call.1} parent=11 // pred_check
          %p306 = pneg %p192
        $region26: #{tpu_custom_call.1} parent=11 // pred_check_branch
          %308 = sbr.rel (%p306) target = $region28
        $region27: #{tpu_custom_call.1} parent=11 // pred_region
          %s310 = ssub.s32 2048, 2048
          %311 = vsyncadd [#allocation12], %s310
          %s312 = smul.addr %s34, 128
          %s313 = scalar_lea.hbm %s5, %s312
          %s314 = sshll.u32 [#allocation11], 4
          %s315 = int_to_ptr.vmem [resolvable:$true] %s314
          %320 = dma.hbm_to_vmem [thread:$0]  %s313, 2048, %s315, [#allocation12], 128, 128, 8
        $region28: #{tpu_custom_call.1} parent=11 // pred_fallthru
          _
        // Predicated region
        $region29: #{tpu_custom_call.1} parent=11 // pred_check
          %p321 = pneg %p218
        $region30: #{tpu_custom_call.1} parent=11 // pred_check_branch
          %323 = sbr.rel (%p321) target = $region32
        $region31: #{tpu_custom_call.1} parent=11 // pred_region
          %p324 = scmp.lt.s32.totalorder %s34, 0
          %s325 = scalar_select %p324, %s34, 0
          %s326 = smul.addr %s325, 4
          %s327 = scalar_lea.vmem %s6, %s326
        $region32: #{tpu_custom_call.1} parent=11 // pred_fallthru
          _
      $region12: #{tpu_custom_call.1} parent=5 // pred_fallthru
        _
      %p328 = scmp.lt.s32.totalorder %s24, 2
      // Predicated region
      $region33: #{tpu_custom_call.1} parent=5 // pred_check
        %p329 = pneg %p328
      $region34: #{tpu_custom_call.1} parent=5 // pred_check_branch
        %331 = sbr.rel (%p329) target = $region36
      $region35: #{tpu_custom_call.1} parent=5 // pred_region
        // Predicated region
        $region37: #{tpu_custom_call.1} parent=35 // pred_check
          %p332 = pneg %p56
        $region38: #{tpu_custom_call.1} parent=35 // pred_check_branch
          %334 = sbr.rel (%p332) target = $region40
        $region39: #{tpu_custom_call.1} parent=35 // pred_region
          %s335 = sand.u32 %s46, 1
          %s336 = scalar_lea.sflag [#allocation3], %s335
          %s337 = sand.u32 %s46, 1
          %s338 = smul.addr %s337, 8
          %s339 = scalar_lea.vmem [#allocation2], %s338
          %s341 = ssub.s32 128, 128
          %342 = vsyncadd %s336, %s341
          %s343 = smul.addr %s31, 128
          %s344 = scalar_lea.hbm %s0, %s343
          %s346 = sshll.u32 %s339, 4
          %s347 = int_to_ptr.vmem [resolvable:$true] %s346
          %349 = dma.hbm_to_vmem [thread:$0]  %s344, 128, %s347, %s336
        $region40: #{tpu_custom_call.1} parent=35 // pred_fallthru
          _
        // Predicated region
        $region41: #{tpu_custom_call.1} parent=35 // pred_check
          %p350 = pneg %p82
        $region42: #{tpu_custom_call.1} parent=35 // pred_check_branch
          %352 = sbr.rel (%p350) target = $region44
        $region43: #{tpu_custom_call.1} parent=35 // pred_region
          %s353 = sand.u32 %s24, 1
          %s354 = scalar_lea.sflag [#allocation6], %s353
          %s355 = sand.u32 %s72, 1
          %s356 = smul.addr %s355, 8
          %s357 = scalar_lea.vmem [#allocation5], %s356
          %s359 = ssub.s32 128, 128
          %360 = vsyncadd %s354, %s359
          %s361 = smul.addr %s31, 128
          %s362 = scalar_lea.hbm %s1, %s361
          %s364 = sshll.u32 %s357, 4
          %s365 = int_to_ptr.vmem [resolvable:$true] %s364
          %367 = dma.hbm_to_vmem [thread:$0]  %s362, 128, %s365, %s354
        $region44: #{tpu_custom_call.1} parent=35 // pred_fallthru
          _
      $region36: #{tpu_custom_call.1} parent=5 // pred_fallthru
        _
      %p368 = scmp.le.s32.totalorder 1, %s24
      %p369 = scmp.lt.s32.totalorder %s24, 3
      %p370 = pnand %p368, %p369
      %p371 = pneg %p370
      // Predicated region
      $region45: #{tpu_custom_call.1} parent=5 // pred_check
        _
      $region46: #{tpu_custom_call.1} parent=5 // pred_check_branch
        %373 = sbr.rel (%p370) target = $region48
      $region47: #{tpu_custom_call.1} parent=5 // pred_region
        %s374 = ssub.s32 %s24, 1
        %s375 = sand.u32 %s49, 1
        %s376 = scalar_lea.sflag [#allocation3], %s375
        %s377 = sand.u32 %s49, 1
        %s378 = smul.addr %s377, 8
        %s379 = scalar_lea.vmem [#allocation2], %s378
        // Predicated region
        $region49: #{tpu_custom_call.1} parent=47 // pred_check
          %p380 = pneg %p62
        $region50: #{tpu_custom_call.1} parent=47 // pred_check_branch
          %382 = sbr.rel (%p380) target = $region52
        $region51: #{tpu_custom_call.1} parent=47 // pred_region
          %383 = dma.done %s376, 128
        $region52: #{tpu_custom_call.1} parent=47 // pred_fallthru
          _
        %s384 = sand.u32 %s29, 1
        %s385 = scalar_lea.sflag [#allocation6], %s384
        %s386 = sand.u32 %s75, 1
        %s387 = smul.addr %s386, 8
        %s388 = scalar_lea.vmem [#allocation5], %s387
        // Predicated region
        $region53: #{tpu_custom_call.1} parent=47 // pred_check
          %p389 = pneg %p88
        $region54: #{tpu_custom_call.1} parent=47 // pred_check_branch
          %391 = sbr.rel (%p389) target = $region56
        $region55: #{tpu_custom_call.1} parent=47 // pred_region
          %392 = dma.done %s385, 128
        $region56: #{tpu_custom_call.1} parent=47 // pred_fallthru
          _
        // Predicated region
        $region57: #{tpu_custom_call.1} parent=47 // pred_check
          %p393 = pneg %p114
        $region58: #{tpu_custom_call.1} parent=47 // pred_check_branch
          %395 = sbr.rel (%p393) target = $region60
        $region59: #{tpu_custom_call.1} parent=47 // pred_region
          %396 = dma.done [#allocation6], 4096
        $region60: #{tpu_custom_call.1} parent=47 // pred_fallthru
          _
        // Predicated region
        $region61: #{tpu_custom_call.1} parent=47 // pred_check
          %p397 = pneg %p140
        $region62: #{tpu_custom_call.1} parent=47 // pred_check_branch
          %399 = sbr.rel (%p397) target = $region64
        $region63: #{tpu_custom_call.1} parent=47 // pred_region
          %400 = dma.done [#allocation9], 4096
        $region64: #{tpu_custom_call.1} parent=47 // pred_fallthru
          _
        // Predicated region
        $region65: #{tpu_custom_call.1} parent=47 // pred_check
          %p401 = pneg %p166
        $region66: #{tpu_custom_call.1} parent=47 // pred_check_branch
          %403 = sbr.rel (%p401) target = $region68
        $region67: #{tpu_custom_call.1} parent=47 // pred_region
          %404 = dma.done [#allocation9], 2048
        $region68: #{tpu_custom_call.1} parent=47 // pred_fallthru
          _
        // Predicated region
        $region69: #{tpu_custom_call.1} parent=47 // pred_check
          %p405 = pneg %p192
        $region70: #{tpu_custom_call.1} parent=47 // pred_check_branch
          %407 = sbr.rel (%p405) target = $region72
        $region71: #{tpu_custom_call.1} parent=47 // pred_region
          %408 = dma.done [#allocation12], 2048
        $region72: #{tpu_custom_call.1} parent=47 // pred_fallthru
          _
        %s409 = sand.u32 %s49, 1
        %s410 = scalar_lea.sflag [#allocation3], %s409
        %s411 = sand.u32 %s49, 1
        %s412 = smul.addr %s411, 8
        %s413 = scalar_lea.vmem [#allocation2], %s412
        %p414 = pneg %p62
        %p415 = pneg %p59
        %s416 = sand.u32 %s29, 1
        %s417 = scalar_lea.sflag [#allocation6], %s416
        %s418 = sand.u32 %s75, 1
        %s419 = smul.addr %s418, 8
        %s420 = scalar_lea.vmem [#allocation5], %s419
        %p421 = pneg %p88
        %p422 = pneg %p85
        %p423 = pneg %p114
        %p424 = pneg %p111
        %p425 = pneg %p140
        %p426 = pneg %p137
        %p427 = pneg %p166
        %p428 = pneg %p163
        %p429 = pneg %p192
        %p430 = pneg %p189
        %p431 = scmp.lt.s32.totalorder %s34, 0
        %s432 = scalar_select %p431, %s34, 0
        %s433 = smul.addr %s432, 4
        %s434 = scalar_lea.vmem %s6, %s433
        %p435 = pneg %p218
        %p436 = pneg %p215
        %p437 = pneg %p246
        %p438 = pneg %p243
        %s439 = sand.u32 %s233, 1
        %s440 = scalar_lea.sflag [#allocation4], %s439
        %s441 = sand.u32 %s233, 1
        %s442 = smul.addr %s441, 8
        %s443 = scalar_lea.vmem [#allocation13], %s442
        %p444 = scmp.lt.s32.totalorder %s34, 0
        %s445 = scalar_select %p444, %s34, 0
        %s446 = smul.addr %s445, 4
        %s447 = scalar_lea.vmem %s6, %s446
        %v448 = vld [vmem:[%s379] sm:$0xff]
        %v449 = vld [vmem:[%s388] sm:$0xff]
        %v450 = vld [vmem:[#allocation7] sm:$0xff]
        %v451 = vld [vmem:[#allocation7 + $0x8] sm:$0xff]
        %v452 = vld [vmem:[#allocation7 + $0x10] sm:$0xff]
        %v453 = vld [vmem:[#allocation7 + $0x18] sm:$0xff]
        %v454 = vld [vmem:[#allocation7 + $0x20] sm:$0xff]
        %v455 = vld [vmem:[#allocation7 + $0x28] sm:$0xff]
        %v456 = vld [vmem:[#allocation7 + $0x30] sm:$0xff]
        %v457 = vld [vmem:[#allocation7 + $0x38] sm:$0xff]
        %v458 = vld [vmem:[#allocation7 + $0x40] sm:$0xff]
        %v459 = vld [vmem:[#allocation7 + $0x48] sm:$0xff]
        %v460 = vld [vmem:[#allocation7 + $0x50] sm:$0xff]
        %v461 = vld [vmem:[#allocation7 + $0x58] sm:$0xff]
        %v462 = vld [vmem:[#allocation7 + $0x60] sm:$0xff]
        %v463 = vld [vmem:[#allocation7 + $0x68] sm:$0xff]
        %v464 = vld [vmem:[#allocation7 + $0x70] sm:$0xff]
        %v465 = vld [vmem:[#allocation7 + $0x78] sm:$0xff]
        %v466 = vld [vmem:[#allocation7 + $0x80] sm:$0xff]
        %v467 = vld [vmem:[#allocation7 + $0x88] sm:$0xff]
        %v468 = vld [vmem:[#allocation7 + $0x90] sm:$0xff]
        %v469 = vld [vmem:[#allocation7 + $0x98] sm:$0xff]
        %v470 = vld [vmem:[#allocation7 + $0xa0] sm:$0xff]
        %v471 = vld [vmem:[#allocation7 + $0xa8] sm:$0xff]
        %v472 = vld [vmem:[#allocation7 + $0xb0] sm:$0xff]
        %v473 = vld [vmem:[#allocation7 + $0xb8] sm:$0xff]
        %v474 = vld [vmem:[#allocation7 + $0xc0] sm:$0xff]
        %v475 = vld [vmem:[#allocation7 + $0xc8] sm:$0xff]
        %v476 = vld [vmem:[#allocation7 + $0xd0] sm:$0xff]
        %v477 = vld [vmem:[#allocation7 + $0xd8] sm:$0xff]
        %v478 = vld [vmem:[#allocation7 + $0xe0] sm:$0xff]
        %v479 = vld [vmem:[#allocation7 + $0xe8] sm:$0xff]
        %v480 = vld [vmem:[#allocation7 + $0xf0] sm:$0xff]
        %v481 = vld [vmem:[#allocation7 + $0xf8] sm:$0xff]
        %v482 = vld [vmem:[%s447] sm:$0x1]
        %v483 = vlaneseq
        %v484 = vshrl.u32 %v483, 7
        %v485 = vsub.s32 0, %v484
        %v486 = vrot.slane %v482, %v485
        %487 = vmatprep.subr.mxu0 0.0
        %488 = vmatpush1.msra.mxu0 %v450
        %489 = vmatprep.subr.mxu0 0.0
        %490 = vmatpush1.msra.mxu0 %v451
        %491 = vmatprep.subr.mxu0 0.0
        %492 = vmatpush1.msra.mxu0 %v452
        %493 = vmatprep.subr.mxu0 0.0
        %494 = vmatpush1.msra.mxu0 %v453
        %495 = vmatprep.subr.mxu0 0.0
        %496 = vmatpush1.msra.mxu0 %v454
        %497 = vmatprep.subr.mxu0 0.0
        %498 = vmatpush1.msra.mxu0 %v455
        %499 = vmatprep.subr.mxu0 0.0
        %500 = vmatpush1.msra.mxu0 %v456
        %501 = vmatprep.subr.mxu0 0.0
        %502 = vmatpush1.msra.mxu0 %v457
        %503 = vmatprep.subr.mxu0 0.0
        %504 = vmatpush1.msra.mxu0 %v458
        %505 = vmatprep.subr.mxu0 0.0
        %506 = vmatpush1.msra.mxu0 %v459
        %507 = vmatprep.subr.mxu0 0.0
        %508 = vmatpush1.msra.mxu0 %v460
        %509 = vmatprep.subr.mxu0 0.0
        %510 = vmatpush1.msra.mxu0 %v461
        %511 = vmatprep.subr.mxu0 0.0
        %512 = vmatpush1.msra.mxu0 %v462
        %513 = vmatprep.subr.mxu0 0.0
        %514 = vmatpush1.msra.mxu0 %v463
        %515 = vmatprep.subr.mxu0 0.0
        %516 = vmatpush1.msra.mxu0 %v464
        %517 = vmatprep.subr.mxu0 0.0
        %518 = vmatpush1.msra.mxu0 %v465
        %519 = vmatprep.subr.mxu0 0.0
        %520 = vmatpush1.msra.mxu0 %v466
        %521 = vmatprep.subr.mxu0 0.0
        %522 = vmatpush1.msra.mxu0 %v467
        %523 = vmatprep.subr.mxu0 0.0
        %524 = vmatpush1.msra.mxu0 %v468
        %525 = vmatprep.subr.mxu0 0.0
        %526 = vmatpush1.msra.mxu0 %v469
        %527 = vmatprep.subr.mxu0 0.0
        %528 = vmatpush1.msra.mxu0 %v470
        %529 = vmatprep.subr.mxu0 0.0
        %530 = vmatpush1.msra.mxu0 %v471
        %531 = vmatprep.subr.mxu0 0.0
        %532 = vmatpush1.msra.mxu0 %v472
        %533 = vmatprep.subr.mxu0 0.0
        %534 = vmatpush1.msra.mxu0 %v473
        %535 = vmatprep.subr.mxu0 0.0
        %536 = vmatpush1.msra.mxu0 %v474
        %537 = vmatprep.subr.mxu0 0.0
        %538 = vmatpush1.msra.mxu0 %v475
        %539 = vmatprep.subr.mxu0 0.0
        %540 = vmatpush1.msra.mxu0 %v476
        %541 = vmatprep.subr.mxu0 0.0
        %542 = vmatpush1.msra.mxu0 %v477
        %543 = vmatprep.subr.mxu0 0.0
        %544 = vmatpush1.msra.mxu0 %v478
        %545 = vmatprep.subr.mxu0 0.0
        %546 = vmatpush1.msra.mxu0 %v479
        %547 = vmatprep.subr.mxu0 0.0
        %548 = vmatpush1.msra.mxu0 %v480
        %549 = vmatprep.subr.mxu0 0.0
        %550 = vmatpush1.msra.mxu0 %v481
        %551 = vmatprep.mubr.f32.mxu0 %v449
        %552 = vmatmul.mubr.f32.gmra.mrb[0].mxu0 %v448
        %v553 = vpop.f32.mrb[0].mxu0
        %v554 = vadd.f32 %v486, %v553
        %v555 = vpop.f32.mrb[0].mxu0
        %556 = vdwg.mxu0
        %v557 = vxor.u32 %v554, 2147483648
        %v558 = vmul.f32 %v557, 1.442695
        %v559 = vpow.pop %v558
        %v560 = vadd.f32 %v559, 1.0
        %v561 = vrcp.pop %v560
        %v562 = vmul.f32 1.0, %v561
        %v563 = vld [vmem:[#allocation8] sm:$0xff]
        %v564 = vld [vmem:[#allocation8 + $0x8] sm:$0xff]
        %v565 = vld [vmem:[#allocation8 + $0x10] sm:$0xff]
        %v566 = vld [vmem:[#allocation8 + $0x18] sm:$0xff]
        %v567 = vld [vmem:[#allocation8 + $0x20] sm:$0xff]
        %v568 = vld [vmem:[#allocation8 + $0x28] sm:$0xff]
        %v569 = vld [vmem:[#allocation8 + $0x30] sm:$0xff]
        %v570 = vld [vmem:[#allocation8 + $0x38] sm:$0xff]
        %v571 = vld [vmem:[#allocation8 + $0x40] sm:$0xff]
        %v572 = vld [vmem:[#allocation8 + $0x48] sm:$0xff]
        %v573 = vld [vmem:[#allocation8 + $0x50] sm:$0xff]
        %v574 = vld [vmem:[#allocation8 + $0x58] sm:$0xff]
        %v575 = vld [vmem:[#allocation8 + $0x60] sm:$0xff]
        %v576 = vld [vmem:[#allocation8 + $0x68] sm:$0xff]
        %v577 = vld [vmem:[#allocation8 + $0x70] sm:$0xff]
        %v578 = vld [vmem:[#allocation8 + $0x78] sm:$0xff]
        %v579 = vld [vmem:[#allocation8 + $0x80] sm:$0xff]
        %v580 = vld [vmem:[#allocation8 + $0x88] sm:$0xff]
        %v581 = vld [vmem:[#allocation8 + $0x90] sm:$0xff]
        %v582 = vld [vmem:[#allocation8 + $0x98] sm:$0xff]
        %v583 = vld [vmem:[#allocation8 + $0xa0] sm:$0xff]
        %v584 = vld [vmem:[#allocation8 + $0xa8] sm:$0xff]
        %v585 = vld [vmem:[#allocation8 + $0xb0] sm:$0xff]
        %v586 = vld [vmem:[#allocation8 + $0xb8] sm:$0xff]
        %v587 = vld [vmem:[#allocation8 + $0xc0] sm:$0xff]
        %v588 = vld [vmem:[#allocation8 + $0xc8] sm:$0xff]
        %v589 = vld [vmem:[#allocation8 + $0xd0] sm:$0xff]
        %v590 = vld [vmem:[#allocation8 + $0xd8] sm:$0xff]
        %v591 = vld [vmem:[#allocation8 + $0xe0] sm:$0xff]
        %v592 = vld [vmem:[#allocation8 + $0xe8] sm:$0xff]
        %v593 = vld [vmem:[#allocation8 + $0xf0] sm:$0xff]
        %v594 = vld [vmem:[#allocation8 + $0xf8] sm:$0xff]
        %v595 = vld [vmem:[%s447 + $0x1] sm:$0x1]
        %v596 = vlaneseq
        %v597 = vshrl.u32 %v596, 7
        %v598 = vsub.s32 0, %v597
        %v599 = vrot.slane %v595, %v598
        %600 = vmatprep.subr.mxu0 0.0
        %601 = vmatpush1.msra.mxu0 %v563
        %602 = vmatprep.subr.mxu0 0.0
        %603 = vmatpush1.msra.mxu0 %v564
        %604 = vmatprep.subr.mxu0 0.0
        %605 = vmatpush1.msra.mxu0 %v565
        %606 = vmatprep.subr.mxu0 0.0
        %607 = vmatpush1.msra.mxu0 %v566
        %608 = vmatprep.subr.mxu0 0.0
        %609 = vmatpush1.msra.mxu0 %v567
        %610 = vmatprep.subr.mxu0 0.0
        %611 = vmatpush1.msra.mxu0 %v568
        %612 = vmatprep.subr.mxu0 0.0
        %613 = vmatpush1.msra.mxu0 %v569
        %614 = vmatprep.subr.mxu0 0.0
        %615 = vmatpush1.msra.mxu0 %v570
        %616 = vmatprep.subr.mxu0 0.0
        %617 = vmatpush1.msra.mxu0 %v571
        %618 = vmatprep.subr.mxu0 0.0
        %619 = vmatpush1.msra.mxu0 %v572
        %620 = vmatprep.subr.mxu0 0.0
        %621 = vmatpush1.msra.mxu0 %v573
        %622 = vmatprep.subr.mxu0 0.0
        %623 = vmatpush1.msra.mxu0 %v574
        %624 = vmatprep.subr.mxu0 0.0
        %625 = vmatpush1.msra.mxu0 %v575
        %626 = vmatprep.subr.mxu0 0.0
        %627 = vmatpush1.msra.mxu0 %v576
        %628 = vmatprep.subr.mxu0 0.0
        %629 = vmatpush1.msra.mxu0 %v577
        %630 = vmatprep.subr.mxu0 0.0
        %631 = vmatpush1.msra.mxu0 %v578
        %632 = vmatprep.subr.mxu0 0.0
        %633 = vmatpush1.msra.mxu0 %v579
        %634 = vmatprep.subr.mxu0 0.0
        %635 = vmatpush1.msra.mxu0 %v580
        %636 = vmatprep.subr.mxu0 0.0
        %637 = vmatpush1.msra.mxu0 %v581
        %638 = vmatprep.subr.mxu0 0.0
        %639 = vmatpush1.msra.mxu0 %v582
        %640 = vmatprep.subr.mxu0 0.0
        %641 = vmatpush1.msra.mxu0 %v583
        %642 = vmatprep.subr.mxu0 0.0
        %643 = vmatpush1.msra.mxu0 %v584
        %644 = vmatprep.subr.mxu0 0.0
        %645 = vmatpush1.msra.mxu0 %v585
        %646 = vmatprep.subr.mxu0 0.0
        %647 = vmatpush1.msra.mxu0 %v586
        %648 = vmatprep.subr.mxu0 0.0
        %649 = vmatpush1.msra.mxu0 %v587
        %650 = vmatprep.subr.mxu0 0.0
        %651 = vmatpush1.msra.mxu0 %v588
        %652 = vmatprep.subr.mxu0 0.0
        %653 = vmatpush1.msra.mxu0 %v589
        %654 = vmatprep.subr.mxu0 0.0
        %655 = vmatpush1.msra.mxu0 %v590
        %656 = vmatprep.subr.mxu0 0.0
        %657 = vmatpush1.msra.mxu0 %v591
        %658 = vmatprep.subr.mxu0 0.0
        %659 = vmatpush1.msra.mxu0 %v592
        %660 = vmatprep.subr.mxu0 0.0
        %661 = vmatpush1.msra.mxu0 %v593
        %662 = vmatprep.subr.mxu0 0.0
        %663 = vmatpush1.msra.mxu0 %v594
        %664 = vmatprep.mubr.f32.mxu0 %v449
        %665 = vmatmul.mubr.f32.gmra.mrb[0].mxu0 %v448
        %v666 = vpop.f32.mrb[0].mxu0
        %v667 = vadd.f32 %v599, %v666
        %v668 = vpop.f32.mrb[0].mxu0
        %669 = vdwg.mxu0
        %v670 = vxor.u32 %v667, 2147483648
        %v671 = vmul.f32 %v670, 1.442695
        %v672 = vpow.pop %v671
        %v673 = vadd.f32 %v672, 1.0
        %v674 = vrcp.pop %v673
        %v675 = vmul.f32 1.0, %v674
        %v676 = vld [vmem:[#allocation11] sm:$0xff]
        %v677 = vld [vmem:[#allocation11 + $0x8] sm:$0xff]
        %v678 = vld [vmem:[#allocation11 + $0x10] sm:$0xff]
        %v679 = vld [vmem:[#allocation11 + $0x18] sm:$0xff]
        %v680 = vld [vmem:[#allocation11 + $0x20] sm:$0xff]
        %v681 = vld [vmem:[#allocation11 + $0x28] sm:$0xff]
        %v682 = vld [vmem:[#allocation11 + $0x30] sm:$0xff]
        %v683 = vld [vmem:[#allocation11 + $0x38] sm:$0xff]
        %v684 = vld [vmem:[#allocation11 + $0x40] sm:$0xff]
        %v685 = vld [vmem:[#allocation11 + $0x48] sm:$0xff]
        %v686 = vld [vmem:[#allocation11 + $0x50] sm:$0xff]
        %v687 = vld [vmem:[#allocation11 + $0x58] sm:$0xff]
        %v688 = vld [vmem:[#allocation11 + $0x60] sm:$0xff]
        %v689 = vld [vmem:[#allocation11 + $0x68] sm:$0xff]
        %v690 = vld [vmem:[#allocation11 + $0x70] sm:$0xff]
        %v691 = vld [vmem:[#allocation11 + $0x78] sm:$0xff]
        %v692 = vld [vmem:[%s447 + $0x3] sm:$0x1]
        %v693 = vlaneseq
        %v694 = vshrl.u32 %v693, 7
        %v695 = vsub.s32 0, %v694
        %v696 = vrot.slane %v692, %v695
        %697 = vmatprep.subr.mxu0 0.0
        %698 = vmatpush1.msra.mxu0 %v676
        %699 = vmatprep.subr.mxu0 0.0
        %700 = vmatpush1.msra.mxu0 %v677
        %701 = vmatprep.subr.mxu0 0.0
        %702 = vmatpush1.msra.mxu0 %v678
        %703 = vmatprep.subr.mxu0 0.0
        %704 = vmatpush1.msra.mxu0 %v679
        %705 = vmatprep.subr.mxu0 0.0
        %706 = vmatpush1.msra.mxu0 %v680
        %707 = vmatprep.subr.mxu0 0.0
        %708 = vmatpush1.msra.mxu0 %v681
        %709 = vmatprep.subr.mxu0 0.0
        %710 = vmatpush1.msra.mxu0 %v682
        %711 = vmatprep.subr.mxu0 0.0
        %712 = vmatpush1.msra.mxu0 %v683
        %713 = vmatprep.subr.mxu0 0.0
        %714 = vmatpush1.msra.mxu0 %v684
        %715 = vmatprep.subr.mxu0 0.0
        %716 = vmatpush1.msra.mxu0 %v685
        %717 = vmatprep.subr.mxu0 0.0
        %718 = vmatpush1.msra.mxu0 %v686
        %719 = vmatprep.subr.mxu0 0.0
        %720 = vmatpush1.msra.mxu0 %v687
        %721 = vmatprep.subr.mxu0 0.0
        %722 = vmatpush1.msra.mxu0 %v688
        %723 = vmatprep.subr.mxu0 0.0
        %724 = vmatpush1.msra.mxu0 %v689
        %725 = vmatprep.subr.mxu0 0.0
        %726 = vmatpush1.msra.mxu0 %v690
        %727 = vmatprep.subr.mxu0 0.0
        %728 = vmatpush1.msra.mxu0 %v691
        %729 = vmatprep.subr.mxu0 0.0
        %730 = vmatpush1.msra.mxu0 0.0
        %731 = vmatprep.subr.mxu0 0.0
        %732 = vmatpush1.msra.mxu0 0.0
        %733 = vmatprep.subr.mxu0 0.0
        %734 = vmatpush1.msra.mxu0 0.0
        %735 = vmatprep.subr.mxu0 0.0
        %736 = vmatpush1.msra.mxu0 0.0
        %737 = vmatprep.subr.mxu0 0.0
        %738 = vmatpush1.msra.mxu0 0.0
        %739 = vmatprep.subr.mxu0 0.0
        %740 = vmatpush1.msra.mxu0 0.0
        %741 = vmatprep.subr.mxu0 0.0
        %742 = vmatpush1.msra.mxu0 0.0
        %743 = vmatprep.subr.mxu0 0.0
        %744 = vmatpush1.msra.mxu0 0.0
        %745 = vmatprep.subr.mxu0 0.0
        %746 = vmatpush1.msra.mxu0 0.0
        %747 = vmatprep.subr.mxu0 0.0
        %748 = vmatpush1.msra.mxu0 0.0
        %749 = vmatprep.subr.mxu0 0.0
        %750 = vmatpush1.msra.mxu0 0.0
        %751 = vmatprep.subr.mxu0 0.0
        %752 = vmatpush1.msra.mxu0 0.0
        %753 = vmatprep.subr.mxu0 0.0
        %754 = vmatpush1.msra.mxu0 0.0
        %755 = vmatprep.subr.mxu0 0.0
        %756 = vmatpush1.msra.mxu0 0.0
        %757 = vmatprep.subr.mxu0 0.0
        %758 = vmatpush1.msra.mxu0 0.0
        %759 = vmatprep.subr.mxu0 0.0
        %760 = vmatpush1.msra.mxu0 0.0
        %761 = vmatprep.mubr.f32.mxu0 0.0
        %762 = vmatmul.mubr.f32.gmra.mrb[0].mxu0 %v449
        %v763 = vpop.f32.mrb[0].mxu0
        %v764 = vadd.f32 %v696, %v763
        %v765 = vpop.f32.mrb[0].mxu0
        %766 = vdwg.mxu0
        %v767 = vld [vmem:[#allocation10] sm:$0xff]
        %v768 = vld [vmem:[#allocation10 + $0x8] sm:$0xff]
        %v769 = vld [vmem:[#allocation10 + $0x10] sm:$0xff]
        %v770 = vld [vmem:[#allocation10 + $0x18] sm:$0xff]
        %v771 = vld [vmem:[#allocation10 + $0x20] sm:$0xff]
        %v772 = vld [vmem:[#allocation10 + $0x28] sm:$0xff]
        %v773 = vld [vmem:[#allocation10 + $0x30] sm:$0xff]
        %v774 = vld [vmem:[#allocation10 + $0x38] sm:$0xff]
        %v775 = vld [vmem:[#allocation10 + $0x40] sm:$0xff]
        %v776 = vld [vmem:[#allocation10 + $0x48] sm:$0xff]
        %v777 = vld [vmem:[#allocation10 + $0x50] sm:$0xff]
        %v778 = vld [vmem:[#allocation10 + $0x58] sm:$0xff]
        %v779 = vld [vmem:[#allocation10 + $0x60] sm:$0xff]
        %v780 = vld [vmem:[#allocation10 + $0x68] sm:$0xff]
        %v781 = vld [vmem:[#allocation10 + $0x70] sm:$0xff]
        %v782 = vld [vmem:[#allocation10 + $0x78] sm:$0xff]
        %v783 = vld [vmem:[%s447 + $0x2] sm:$0x1]
        %v784 = vlaneseq
        %v785 = vshrl.u32 %v784, 7
        %v786 = vsub.s32 0, %v785
        %v787 = vrot.slane %v783, %v786
        %788 = vmatprep.subr.mxu0 0.0
        %789 = vmatpush1.msra.mxu0 %v767
        %790 = vmatprep.subr.mxu0 0.0
        %791 = vmatpush1.msra.mxu0 %v768
        %792 = vmatprep.subr.mxu0 0.0
        %793 = vmatpush1.msra.mxu0 %v769
        %794 = vmatprep.subr.mxu0 0.0
        %795 = vmatpush1.msra.mxu0 %v770
        %796 = vmatprep.subr.mxu0 0.0
        %797 = vmatpush1.msra.mxu0 %v771
        %798 = vmatprep.subr.mxu0 0.0
        %799 = vmatpush1.msra.mxu0 %v772
        %800 = vmatprep.subr.mxu0 0.0
        %801 = vmatpush1.msra.mxu0 %v773
        %802 = vmatprep.subr.mxu0 0.0
        %803 = vmatpush1.msra.mxu0 %v774
        %804 = vmatprep.subr.mxu0 0.0
        %805 = vmatpush1.msra.mxu0 %v775
        %806 = vmatprep.subr.mxu0 0.0
        %807 = vmatpush1.msra.mxu0 %v776
        %808 = vmatprep.subr.mxu0 0.0
        %809 = vmatpush1.msra.mxu0 %v777
        %810 = vmatprep.subr.mxu0 0.0
        %811 = vmatpush1.msra.mxu0 %v778
        %812 = vmatprep.subr.mxu0 0.0
        %813 = vmatpush1.msra.mxu0 %v779
        %814 = vmatprep.subr.mxu0 0.0
        %815 = vmatpush1.msra.mxu0 %v780
        %816 = vmatprep.subr.mxu0 0.0
        %817 = vmatpush1.msra.mxu0 %v781
        %818 = vmatprep.subr.mxu0 0.0
        %819 = vmatpush1.msra.mxu0 %v782
        %820 = vmatprep.subr.mxu0 0.0
        %821 = vmatpush1.msra.mxu0 0.0
        %822 = vmatprep.subr.mxu0 0.0
        %823 = vmatpush1.msra.mxu0 0.0
        %824 = vmatprep.subr.mxu0 0.0
        %825 = vmatpush1.msra.mxu0 0.0
        %826 = vmatprep.subr.mxu0 0.0
        %827 = vmatpush1.msra.mxu0 0.0
        %828 = vmatprep.subr.mxu0 0.0
        %829 = vmatpush1.msra.mxu0 0.0
        %830 = vmatprep.subr.mxu0 0.0
        %831 = vmatpush1.msra.mxu0 0.0
        %832 = vmatprep.subr.mxu0 0.0
        %833 = vmatpush1.msra.mxu0 0.0
        %834 = vmatprep.subr.mxu0 0.0
        %835 = vmatpush1.msra.mxu0 0.0
        %836 = vmatprep.subr.mxu0 0.0
        %837 = vmatpush1.msra.mxu0 0.0
        %838 = vmatprep.subr.mxu0 0.0
        %839 = vmatpush1.msra.mxu0 0.0
        %840 = vmatprep.subr.mxu0 0.0
        %841 = vmatpush1.msra.mxu0 0.0
        %842 = vmatprep.subr.mxu0 0.0
        %843 = vmatpush1.msra.mxu0 0.0
        %844 = vmatprep.subr.mxu0 0.0
        %845 = vmatpush1.msra.mxu0 0.0
        %846 = vmatprep.subr.mxu0 0.0
        %847 = vmatpush1.msra.mxu0 0.0
        %848 = vmatprep.subr.mxu0 0.0
        %849 = vmatpush1.msra.mxu0 0.0
        %850 = vmatprep.subr.mxu0 0.0
        %851 = vmatpush1.msra.mxu0 0.0
        %852 = vmatprep.mubr.f32.mxu0 0.0
        %853 = vmatmul.mubr.f32.gmra.mrb[0].mxu0 %v448
        %v854 = vpop.f32.mrb[0].mxu0
        %v855 = vadd.f32 %v787, %v854
        %v856 = vpop.f32.mrb[0].mxu0
        %857 = vdwg.mxu0
        %v858 = vmul.f32 %v562, %v764
        %v859 = vadd.f32 %v855, %v858
        %v860 = vtanh.pop %v859
        %v861 = vsub.f32 %v449, %v860
        %v862 = vmul.f32 %v675, %v861
        %v863 = vadd.f32 %v860, %v862
        %864 = vst [vmem:[%s443] sm:$0xff] %v863
        %s865 = sand.u32 %s233, 1
        %s866 = scalar_lea.sflag [#allocation4], %s865
        %s867 = sand.u32 %s233, 1
        %s868 = smul.addr %s867, 8
        %s869 = scalar_lea.vmem [#allocation13], %s868
        // Predicated region
        $region73: #{tpu_custom_call.1} parent=47 // pred_check
          %p870 = pneg %p243
        $region74: #{tpu_custom_call.1} parent=47 // pred_check_branch
          %872 = sbr.rel (%p870) target = $region76
        $region75: #{tpu_custom_call.1} parent=47 // pred_region
          %s874 = ssub.s32 128, 128
          %875 = vsyncadd %s866, %s874
          %s876 = sadd.s32 %s34, %s33
          %s877 = smul.addr %s876, 128
          %s878 = scalar_lea.hbm %s7, %s877
          %s880 = sshll.u32 %s869, 4
          %s881 = int_to_ptr.vmem [resolvable:$true] %s880
          %883 = dma.vmem_to_hbm [thread:$0]  %s881, 128, %s878, %s866
        $region76: #{tpu_custom_call.1} parent=47 // pred_fallthru
          _
      $region48: #{tpu_custom_call.1} parent=5 // pred_fallthru
        _
      %p884 = scmp.le.s32.totalorder 2, %s24
      // Predicated region
      $region77: #{tpu_custom_call.1} parent=5 // pred_check
        %p885 = pneg %p884
      $region78: #{tpu_custom_call.1} parent=5 // pred_check_branch
        %887 = sbr.rel (%p885) target = $region80
      $region79: #{tpu_custom_call.1} parent=5 // pred_region
        %s888 = ssub.s32 %s24, 2
        // Predicated region
        $region81: #{tpu_custom_call.1} parent=79 // pred_check
          %p889 = pneg %p249
        $region82: #{tpu_custom_call.1} parent=79 // pred_check_branch
          %891 = sbr.rel (%p889) target = $region84
        $region83: #{tpu_custom_call.1} parent=79 // pred_region
          %s892 = sand.u32 %s234, 1
          %s893 = scalar_lea.sflag [#allocation4], %s892
          %s894 = sand.u32 %s234, 1
          %s895 = smul.addr %s894, 8
          %s896 = scalar_lea.vmem [#allocation13], %s895
          %897 = dma.done %s893, 128
        $region84: #{tpu_custom_call.1} parent=79 // pred_fallthru
          _
      $region80: #{tpu_custom_call.1} parent=5 // pred_fallthru
        _
    $region6: #{tpu_custom_call.1} parent=1 // loop_footer
      %s28 = sadd.s32 1, %s24
    $region7: #{tpu_custom_call.1} parent=1 // loop_footer_branch
      %23 = sbr.rel target = $region3
    $region8: #{tpu_custom_call.1} parent=1 // loop_exit
      _
    %898 = vsyncpa [#allocation3], 1
    %s899 = scalar_lea.sflag [#allocation3], 1
    %900 = vsyncpa %s899, 1
    %901 = vsyncpa [#allocation6], 1
    %s902 = scalar_lea.sflag [#allocation6], 1
    %903 = vsyncpa %s902, 1
    %904 = vsyncpa [#allocation9], 1
    %905 = vsyncpa [#allocation12], 1
    %906 = vsyncpa [#allocation4], 1
    %s907 = scalar_lea.sflag [#allocation4], 1
    %908 = vsyncpa %s907, 1

</llo_original>
